<compile_context>
chip_gen: v5e
topology: v5e:2x2
jax: 0.10.0
libtpu: 0.0.40
codegen_flags: <defaults>
</compile_context>

<pallas_src>
import jax
import jax.numpy as jnp
from jax.experimental import pallas as pl
from jax.experimental.pallas import tpu as pltpu


# ----------------------------- kernel --------------------------------------
def msd_kernel(x_ref, m_ref, w_ref, b_ref, o_ref):
    # (tm, H) * (tm, H) -> single MXU matmul with (H, O) -> (tm, O) + bias.
    xm = x_ref[...] * m_ref[...]
    out = jnp.dot(xm, w_ref[...], preferred_element_type=jnp.float32)
    o_ref[...] = (out + b_ref[...]).astype(o_ref.dtype)


# ----------------------------- wrapper --------------------------------------
def multisample_dropout_linear(x, mask, w, b, *, block_m=256):
    """x, mask: (B, H) f32; w: (H, O) f32; b: (1, O) f32 -> (B, O) f32."""
    B, H = x.shape
    O = w.shape[1]

    tm = min(B, block_m)
    assert B % tm == 0, "batch must divide the batch tile"
    grid = (B // tm,)

    return pl.pallas_call(
        msd_kernel,
        out_shape=jax.ShapeDtypeStruct((B, O), x.dtype),
        grid=grid,
        in_specs=[
            pl.BlockSpec((tm, H), lambda i: (i, 0)),   # x tile (pipelined)
            pl.BlockSpec((tm, H), lambda i: (i, 0)),   # combined mask tile
            pl.BlockSpec((H, O), lambda i: (0, 0)),    # weights, resident
            pl.BlockSpec((1, O), lambda i: (0, 0)),    # bias, resident
        ],
        out_specs=pl.BlockSpec((tm, O), lambda i: (i, 0)),  # lane-dense store
        compiler_params=pltpu.CompilerParams(
            dimension_semantics=("parallel",),         # megacore-shard batch
        ),
    )(x, mask, w, b)


def make_dropout_masks(key, shape, base_p=0.1, sample_ps=(0.1, 0.2, 0.3, 0.4, 0.5)):
    """Inverted-dropout scale masks: base mask and the 5 per-sample masks."""
    keys = jax.random.split(key, 1 + len(sample_ps))
    base = (
        jax.random.bernoulli(keys[0], 1.0 - base_p, shape).astype(jnp.float32)
        / (1.0 - base_p)
    )
    samples = [
        jax.random.bernoulli(keys[i + 1], 1.0 - p, shape).astype(jnp.float32)
        / (1.0 - p)
        for i, p in enumerate(sample_ps)
    ]
    return base, samples


# ------------------------------- main ---------------------------------------
if __name__ == "__main__":
    B, H, O = 8, 128, 128  # small, tile-aligned (sublane 8 / lane 128)

    key = jax.random.PRNGKey(0)
    kx, kw, kb, kd = jax.random.split(key, 4)

    x = jax.random.normal(kx, (B, H), dtype=jnp.float32)

    # PyTorch-Linear-style uniform init for `module` (weight is (out, in)).
    bound = 1.0 / (H ** 0.5)
    w_pt = jax.random.uniform(kw, (O, H), jnp.float32, -bound, bound)
    b_pt = jax.random.uniform(kb, (O,), jnp.float32, -bound, bound)
    w = w_pt.T                  # (H, O) so the kernel computes x @ W + b
    b = b_pt.reshape(1, O)

    # Dropout masks (inverted dropout, training mode), combined via linearity.
    base_mask, sample_masks = make_dropout_masks(kd, (B, H))
    combined = base_mask * (sum(sample_masks) / float(len(sample_masks)))

    out = multisample_dropout_linear(x, combined, w, b)
    jax.block_until_ready(out)

    # Reference: literal 5-sample mean of Linear(dropout_i(dropout(x))).
    xd = x * base_mask
    ref = sum((xd * m) @ w + b for m in sample_masks) / float(len(sample_masks))

    assert out.shape == (B, O) and out.dtype == jnp.float32
    assert jnp.allclose(out, ref, rtol=1e-5, atol=1e-5)
    print("KERNEL_OK")
</pallas_src>

<mosaic_0001>
module attributes {stable_mosaic.version = 11 : i64} {
  func.func @msd_kernel(%arg0: i32, %arg1: memref<8x128xf32, #tpu.memory_space<vmem>>, %arg2: memref<8x128xf32, #tpu.memory_space<vmem>>, %arg3: memref<128x128xf32, #tpu.memory_space<vmem>>, %arg4: memref<1x128xf32, #tpu.memory_space<vmem>>, %arg5: memref<8x128xf32, #tpu.memory_space<vmem>>) attributes {dimension_semantics = [#tpu.dimension_semantics<parallel>], iteration_bounds = array<i64: 1>, scalar_prefetch = 0 : i64, scratch_operands = 0 : i64, tpu.core_type = #tpu.core_type<tc>, window_params = [{transform_indices = @transform_0, window_bounds = array<i64: 8, 128>}, {transform_indices = @transform_1, window_bounds = array<i64: 8, 128>}, {pipeline_mode = #tpu.pipeline_mode<synchronous>, transform_indices = @transform_2, window_bounds = array<i64: 128, 128>}, {pipeline_mode = #tpu.pipeline_mode<synchronous>, transform_indices = @transform_3, window_bounds = array<i64: 1, 128>}, {transform_indices = @transform_4, window_bounds = array<i64: 8, 128>}]} {
    %c0 = arith.constant 0 : index
    %c0_0 = arith.constant 0 : index
    %0 = vector.load %arg1[%c0, %c0_0] : memref<8x128xf32, #tpu.memory_space<vmem>>, vector<8x128xf32>
    %c0_1 = arith.constant 0 : index
    %c0_2 = arith.constant 0 : index
    %1 = vector.load %arg2[%c0_1, %c0_2] : memref<8x128xf32, #tpu.memory_space<vmem>>, vector<8x128xf32>
    %2 = arith.mulf %0, %1 : vector<8x128xf32>
    %c0_3 = arith.constant 0 : index
    %c0_4 = arith.constant 0 : index
    %3 = vector.load %arg3[%c0_3, %c0_4] : memref<128x128xf32, #tpu.memory_space<vmem>>, vector<128x128xf32>
    %cst = arith.constant dense<0.000000e+00> : vector<8x128xf32>
    %4 = tpu.matmul %2, %3, %cst {dimension_numbers = #tpu.dot_dimension_numbers<[1], [0], [0], [1], [0, 0, 1, 1], [], []>} : vector<8x128xf32>, vector<128x128xf32>, vector<8x128xf32> -> vector<8x128xf32>
    %c0_5 = arith.constant 0 : index
    %c0_6 = arith.constant 0 : index
    %5 = vector.load %arg4[%c0_5, %c0_6] : memref<1x128xf32, #tpu.memory_space<vmem>>, vector<1x128xf32>
    %6 = vector.broadcast %5 : vector<1x128xf32> to vector<8x128xf32>
    %7 = arith.addf %4, %6 : vector<8x128xf32>
    %c0_7 = arith.constant 0 : index
    %c0_8 = arith.constant 0 : index
    %8 = vector.load %arg5[%c0_7, %c0_8] : memref<8x128xf32, #tpu.memory_space<vmem>>, vector<8x128xf32>
    tpu.vector_store %arg5[%c0_7, %c0_8], %7 {strides = array<i32>} : memref<8x128xf32, #tpu.memory_space<vmem>>, vector<8x128xf32>,
    return
  }
  func.func @transform_0(%arg0: i32) -> (i32, i32) {
    %c0_i32 = arith.constant 0 : i32
    %c0_i32_0 = arith.constant 0 : i32
    return %arg0, %c0_i32 : i32, i32
  }
  func.func @transform_1(%arg0: i32) -> (i32, i32) {
    %c0_i32 = arith.constant 0 : i32
    %c0_i32_0 = arith.constant 0 : i32
    return %arg0, %c0_i32 : i32, i32
  }
  func.func @transform_2(%arg0: i32) -> (i32, i32) {
    %c0_i32 = arith.constant 0 : i32
    %c0_i32_0 = arith.constant 0 : i32
    %c0_i32_1 = arith.constant 0 : i32
    return %c0_i32, %c0_i32_0 : i32, i32
  }
  func.func @transform_3(%arg0: i32) -> (i32, i32) {
    %c0_i32 = arith.constant 0 : i32
    %c0_i32_0 = arith.constant 0 : i32
    %c0_i32_1 = arith.constant 0 : i32
    return %c0_i32, %c0_i32_0 : i32, i32
  }
  func.func @transform_4(%arg0: i32) -> (i32, i32) {
    %c0_i32 = arith.constant 0 : i32
    %c0_i32_0 = arith.constant 0 : i32
    return %arg0, %c0_i32 : i32, i32
  }
}

</mosaic_0001>

<llo_original>
// kernel: tpu_custom_call.1
$region0: #{tpu_custom_call.1}
  #allocation0 [shape = 'u32[]', space=smem, size = 0x4, offset = 0x4, fixed_abs, tag = 'smem constant byte address 0x4 - core index']
  #allocation1 [shape = 'u32[72,128]{1,0:T(1,128)}', space=vmem, size = 0x9000, scoped, tag = 'internal scratch']
  %s0 = inlined_call_operand.hbm [shape: f32[8,128], index: 0, kind: input, shape index: {}]
  %s1 = inlined_call_operand.hbm [shape: f32[8,128], index: 1, kind: input, shape index: {}]
  %s2 = inlined_call_operand.hbm [shape: f32[128,128], index: 2, kind: input, shape index: {}]
  %s3 = inlined_call_operand.vmem [shape: f32[1,128], index: 3, kind: input, shape index: {}]
  %s4 = inlined_call_operand.hbm [shape: f32[8,128], index: 4, kind: output, shape index: {}]
  %s5 = sld [smem:[#allocation0]]
  $region38: #{tpu_custom_call.1} parent=0
    _
  %s7 = ssub.s32 1, %s5
  %s8 = scalar_select 0, %s7, %s5
  $region1: #{tpu_custom_call.1} parent=0
    #allocation2 [shape = 'u8[4096]{0}', space=vmem, size = 0x1000, scoped, tag = 'input window, operand 0, single buffered']
    #allocation3 [shape = 's32[1]{0}', space=sflag, size = 0x4, scoped, tag = 'scoped memory for tpu_custom_call.1']
    #allocation4 [shape = 's32[1]{0}', space=sflag, size = 0x4, scoped, tag = 'scoped memory for tpu_custom_call.1']
    #allocation5 [shape = 'u8[4096]{0}', space=vmem, size = 0x1000, scoped, tag = 'input window, operand 1, single buffered']
    #allocation6 [shape = 's32[1]{0}', space=sflag, size = 0x4, scoped, tag = 'scoped memory for tpu_custom_call.1']
    #allocation7 [shape = 'u8[65536]{0}', space=vmem, size = 0x10000, scoped, tag = 'input window, operand 2, single buffered']
    #allocation8 [shape = 'u8[4096]{0}', space=vmem, size = 0x1000, scoped, tag = 'output window, operand 0, single buffered']
    %9 = vsyncpa [#allocation3], 0
    %10 = vsyncpa [#allocation6], 0
    %11 = vsyncpa [#allocation4], 0
    // Predicated region
    $region2: #{tpu_custom_call.1} parent=1 // pred_check
      _
    $region3: #{tpu_custom_call.1} parent=1 // pred_check_branch
      %13 = sbr.rel (0) target = $region5
    $region4: #{tpu_custom_call.1} parent=1 // pred_region
      %15 = vsyncadd [#allocation3], 0
      %s17 = sshll.u32 %s0, 4
      %s18 = int_to_ptr.hbm [resolvable:$true] %s17
      %s19 = sshll.u32 [#allocation2], 4
      %s20 = int_to_ptr.vmem [resolvable:$true] %s19
      %22 = dma.hbm_to_vmem [thread:$0]  %s18, 128, %s20, [#allocation3]
    $region5: #{tpu_custom_call.1} parent=1 // pred_fallthru
      _
    // Predicated region
    $region6: #{tpu_custom_call.1} parent=1 // pred_check
      _
    $region7: #{tpu_custom_call.1} parent=1 // pred_check_branch
      %24 = sbr.rel (0) target = $region9
    $region8: #{tpu_custom_call.1} parent=1 // pred_region
      %26 = vsyncadd [#allocation6], 0
      %s28 = sshll.u32 %s1, 4
      %s29 = int_to_ptr.hbm [resolvable:$true] %s28
      %s30 = sshll.u32 [#allocation5], 4
      %s31 = int_to_ptr.vmem [resolvable:$true] %s30
      %33 = dma.hbm_to_vmem [thread:$0]  %s29, 128, %s31, [#allocation6]
    $region9: #{tpu_custom_call.1} parent=1 // pred_fallthru
      _
    // Predicated region
    $region10: #{tpu_custom_call.1} parent=1 // pred_check
      _
    $region11: #{tpu_custom_call.1} parent=1 // pred_check_branch
      %35 = sbr.rel (0) target = $region13
    $region12: #{tpu_custom_call.1} parent=1 // pred_region
      %37 = vsyncadd [#allocation6], 0
      %s38 = sshll.u32 %s2, 4
      %s39 = int_to_ptr.hbm [resolvable:$true] %s38
      %s40 = sshll.u32 [#allocation7], 4
      %s41 = int_to_ptr.vmem [resolvable:$true] %s40
      %46 = dma.hbm_to_vmem [thread:$0]  %s39, 2048, %s41, [#allocation6], 128, 128, 8
    $region13: #{tpu_custom_call.1} parent=1 // pred_fallthru
      _
    // Predicated region
    $region14: #{tpu_custom_call.1} parent=1 // pred_check
      _
    $region15: #{tpu_custom_call.1} parent=1 // pred_check_branch
      %48 = sbr.rel (0) target = $region17
    $region16: #{tpu_custom_call.1} parent=1 // pred_region
      _
    $region17: #{tpu_custom_call.1} parent=1 // pred_fallthru
      _
    // Predicated region
    $region18: #{tpu_custom_call.1} parent=1 // pred_check
      _
    $region19: #{tpu_custom_call.1} parent=1 // pred_check_branch
      %50 = sbr.rel (0) target = $region21
    $region20: #{tpu_custom_call.1} parent=1 // pred_region
      %52 = dma.done [#allocation3], 128
    $region21: #{tpu_custom_call.1} parent=1 // pred_fallthru
      _
    // Predicated region
    $region22: #{tpu_custom_call.1} parent=1 // pred_check
      _
    $region23: #{tpu_custom_call.1} parent=1 // pred_check_branch
      %54 = sbr.rel (0) target = $region25
    $region24: #{tpu_custom_call.1} parent=1 // pred_region
      %56 = dma.done [#allocation6], 128
    $region25: #{tpu_custom_call.1} parent=1 // pred_fallthru
      _
    // Predicated region
    $region26: #{tpu_custom_call.1} parent=1 // pred_check
      _
    $region27: #{tpu_custom_call.1} parent=1 // pred_check_branch
      %58 = sbr.rel (0) target = $region29
    $region28: #{tpu_custom_call.1} parent=1 // pred_region
      %60 = dma.done [#allocation6], 2048
    $region29: #{tpu_custom_call.1} parent=1 // pred_fallthru
      _
    %v61 = vld [vmem:[#allocation2] sm:$0xff]
    %v62 = vld [vmem:[#allocation5] sm:$0xff]
    %v63 = vmul.f32 %v61, %v62
    %v64 = vld [vmem:[#allocation7] sm:$0xff]
    %v65 = vld [vmem:[#allocation7 + $0x8] sm:$0xff]
    %v66 = vld [vmem:[#allocation7 + $0x10] sm:$0xff]
    %v67 = vld [vmem:[#allocation7 + $0x18] sm:$0xff]
    %v68 = vld [vmem:[#allocation7 + $0x20] sm:$0xff]
    %v69 = vld [vmem:[#allocation7 + $0x28] sm:$0xff]
    %v70 = vld [vmem:[#allocation7 + $0x30] sm:$0xff]
    %v71 = vld [vmem:[#allocation7 + $0x38] sm:$0xff]
    %v72 = vld [vmem:[#allocation7 + $0x40] sm:$0xff]
    %v73 = vld [vmem:[#allocation7 + $0x48] sm:$0xff]
    %v74 = vld [vmem:[#allocation7 + $0x50] sm:$0xff]
    %v75 = vld [vmem:[#allocation7 + $0x58] sm:$0xff]
    %v76 = vld [vmem:[#allocation7 + $0x60] sm:$0xff]
    %v77 = vld [vmem:[#allocation7 + $0x68] sm:$0xff]
    %v78 = vld [vmem:[#allocation7 + $0x70] sm:$0xff]
    %v79 = vld [vmem:[#allocation7 + $0x78] sm:$0xff]
    %v80 = vld [vmem:[%s3] sm:$0x1]
    %v82 = vperm.slane %v80, 0
    %84 = vmatpush.msra.mxu0 %v79
    %85 = vmatpush.msra.mxu0 %v78
    %86 = vmatpush.msra.mxu0 %v77
    %87 = vmatpush.msra.mxu0 %v76
    %88 = vmatpush.msra.mxu0 %v75
    %89 = vmatpush.msra.mxu0 %v74
    %90 = vmatpush.msra.mxu0 %v73
    %91 = vmatpush.msra.mxu0 %v72
    %92 = vmatpush.msra.mxu0 %v71
    %93 = vmatpush.msra.mxu0 %v70
    %94 = vmatpush.msra.mxu0 %v69
    %95 = vmatpush.msra.mxu0 %v68
    %96 = vmatpush.msra.mxu0 %v67
    %97 = vmatpush.msra.mxu0 %v66
    %98 = vmatpush.msra.mxu0 %v65
    %99 = vmatpush.msra.mxu0 %v64
    %100 = vmatmul.f32.gmra.mxu0 %v63
    %v101 = vpop.f32.mrf.mxu0
    %v102 = vadd.f32 %v82, %v101
    %103 = vdwg.mxu0
    %104 = vst [vmem:[#allocation8] sm:$0xff] %v102
    // Predicated region
    $region30: #{tpu_custom_call.1} parent=1 // pred_check
      _
    $region31: #{tpu_custom_call.1} parent=1 // pred_check_branch
      %106 = sbr.rel (0) target = $region33
    $region32: #{tpu_custom_call.1} parent=1 // pred_region
      %108 = vsyncadd [#allocation4], 0
      %s110 = sshll.u32 [#allocation8], 4
      %s111 = int_to_ptr.vmem [resolvable:$true] %s110
      %s112 = sshll.u32 %s4, 4
      %s113 = int_to_ptr.hbm [resolvable:$true] %s112
      %115 = dma.vmem_to_hbm [thread:$0]  %s111, 128, %s113, [#allocation4]
    $region33: #{tpu_custom_call.1} parent=1 // pred_fallthru
      _
    // Predicated region
    $region34: #{tpu_custom_call.1} parent=1 // pred_check
      _
    $region35: #{tpu_custom_call.1} parent=1 // pred_check_branch
      %117 = sbr.rel (0) target = $region37
    $region36: #{tpu_custom_call.1} parent=1 // pred_region
      %119 = dma.done [#allocation4], 128
    $region37: #{tpu_custom_call.1} parent=1 // pred_fallthru
      _
    %120 = vsyncpa [#allocation3], 1
    %121 = vsyncpa [#allocation6], 1
    %122 = vsyncpa [#allocation4], 1

</llo_original>
